<compile_context>
chip_gen: v7x
topology: tpu7x:2x2x1
jax: 0.10.0
libtpu: 0.0.40
codegen_flags: <defaults>
</compile_context>

<pallas_src>
import jax
import jax.numpy as jnp
from jax.experimental import pallas as pl
from jax.experimental.pallas import tpu as pltpu

EPS = 1e-5
ROW_TILE = 512                      # rows per grid step (multiple of 8)
VMEM_LIMIT_BYTES = 32 * 1024 * 1024  # safe on v5e/v6e/v7x; usage is ~KBs here


def _round_up(x, m):
    return (x + m - 1) // m * m


def _pick_row_tile(n_rows, max_tile=ROW_TILE):
    """Pick a row-tile (multiple of 8) and the padded row count.

    Prefers a tile that divides n_rows exactly (no zero-pad copy of the
    input); otherwise pads rows up to a tile multiple.
    """
    if n_rows % 8 == 0:
        for t in range(min(n_rows, max_tile), 7, -8):
            if n_rows % t == 0:
                return t, n_rows
    tile = min(max_tile, _round_up(n_rows, 8))
    return tile, _round_up(n_rows, tile)


def _stats_kernel(x_ref, w_ref, sum_ref, sq_ref):
    """Pass 1: accumulate per-out-channel sum / sum-of-squares of y0 = x @ W.

    Bias-free on purpose: zero-padded rows give y0 == 0 and contribute nothing
    to the statistics, and the conv bias cancels in training-mode BatchNorm.
    """
    @pl.when(pl.program_id(0) == 0)
    def _init():
        sum_ref[...] = jnp.zeros_like(sum_ref)
        sq_ref[...] = jnp.zeros_like(sq_ref)

    y0 = jnp.dot(x_ref[...], w_ref[...], preferred_element_type=jnp.float32)
    sum_ref[...] += jnp.sum(y0, axis=0, keepdims=True)
    sq_ref[...] += jnp.sum(y0 * y0, axis=0, keepdims=True)


def _apply_kernel(x_ref, w_ref, b_ref, o_ref):
    """Pass 2: out = relu(x @ W' + b') with BatchNorm folded into W', b'."""
    y = jnp.dot(x_ref[...], w_ref[...], preferred_element_type=jnp.float32)
    o_ref[...] = jnp.maximum(y + b_ref[...], 0.0).astype(o_ref.dtype)


def reconstruct_forward(x, conv_w, conv_b, gamma, beta, scale_factor,
                        *, compute_dtype=jnp.float32):
    """x: (B, n_patch, hidden) float32 -> (B, out_c, h*sf, w*sf) NCHW float32.

    compute_dtype: dtype of the matmul operands fed to the MXU (f32 default =
    bit-faithful to the PyTorch module; bf16 halves input HBM traffic).
    Accumulation and all BatchNorm math stay in float32.
    """
    if x is None:
        return None

    B, n_patch, hidden = x.shape
    h = w = int(round(n_patch ** 0.5))
    assert h * w == n_patch, "n_patch must be a perfect square"
    out_c = conv_w.shape[0]
    assert conv_w.shape[-2:] == (1, 1), "only the kernel_size=1 branch is implemented"
    sf = int(scale_factor)

    # (B, n_patch, hidden) is already channels-last rows for a 1x1 conv.
    rows = x.reshape(B * h * w, hidden).astype(jnp.float32)
    R = rows.shape[0]

    tile, R_pad = _pick_row_tile(R)
    if R_pad != R:
        rows = jnp.pad(rows, ((0, R_pad - R), (0, 0)))  # zero rows: no stats effect

    w2 = conv_w.reshape(out_c, hidden).T.astype(jnp.float32)      # (C_in, C_out)
    g2 = gamma.reshape(1, out_c).astype(jnp.float32)
    be2 = beta.reshape(1, out_c).astype(jnp.float32)
    # NOTE: conv_b has zero effect on the forward output in training-mode BN
    # (it only shifts the batch mean, which is subtracted); it is accepted for
    # interface fidelity but not needed in the folded parameters below.
    del conv_b

    rows_c = rows.astype(compute_dtype)
    w2_c = w2.astype(compute_dtype)

    grid = (R_pad // tile,)

    # ---- Pass 1: per-channel batch statistics of y0 = x @ W ---------------
    sum0, sq0 = pl.pallas_call(
        _stats_kernel,
        out_shape=(jax.ShapeDtypeStruct((1, out_c), jnp.float32),
                   jax.ShapeDtypeStruct((1, out_c), jnp.float32)),
        grid=grid,
        in_specs=[
            pl.BlockSpec((tile, hidden), lambda i: (i, 0)),
            pl.BlockSpec((hidden, out_c), lambda i: (0, 0)),
        ],
        out_specs=(
            pl.BlockSpec((1, out_c), lambda i: (0, 0)),
            pl.BlockSpec((1, out_c), lambda i: (0, 0)),
        ),
        compiler_params=pltpu.CompilerParams(
            dimension_semantics=("arbitrary",),
            vmem_limit_bytes=VMEM_LIMIT_BYTES),
    )(rows_c, w2_c)

    # ---- Fold BatchNorm (training-mode, biased variance) into the conv ----
    mean0 = sum0 / R                                   # E[x @ W]
    var = jnp.maximum(sq0 / R - mean0 * mean0, 0.0)    # Var(y), bias-invariant
    scale = g2 * jax.lax.rsqrt(var + EPS)              # (1, C_out)
    w_fold = (w2 * scale).astype(compute_dtype)        # (C_in, C_out)
    b_fold = be2 - mean0 * scale                       # (1, C_out), f32

    # ---- Pass 2: fused 1x1 conv + BN + ReLU, row-parallel ------------------
    out2d = pl.pallas_call(
        _apply_kernel,
        out_shape=jax.ShapeDtypeStruct((R_pad, out_c), jnp.float32),
        grid=grid,
        in_specs=[
            pl.BlockSpec((tile, hidden), lambda i: (i, 0)),
            pl.BlockSpec((hidden, out_c), lambda i: (0, 0)),
            pl.BlockSpec((1, out_c), lambda i: (0, 0)),
        ],
        out_specs=pl.BlockSpec((tile, out_c), lambda i: (i, 0)),
        compiler_params=pltpu.CompilerParams(
            dimension_semantics=("parallel",),
            vmem_limit_bytes=VMEM_LIMIT_BYTES),
    )(rows_c, w_fold, b_fold)

    # conv/BN/ReLU commute with nearest upsample: replicate the small output.
    out_small = jnp.transpose(out2d[:R].reshape(B, h, w, out_c), (0, 3, 1, 2))
    out_up = jnp.broadcast_to(out_small[:, :, :, None, :, None],
                              (B, out_c, h, sf, w, sf))
    return out_up.reshape(B, out_c, h * sf, w * sf)


def _reference_forward(x, conv_w, conv_b, gamma, beta, scale_factor):
    """Pure-JAX reference following the module's literal op order."""
    B, n_patch, hidden = x.shape
    h = w = int(round(n_patch ** 0.5))
    x_nchw = jnp.transpose(x, (0, 2, 1)).reshape(B, hidden, h, w)
    x_up = jnp.repeat(jnp.repeat(x_nchw, scale_factor, axis=2), scale_factor, axis=3)
    out_c = conv_w.shape[0]
    y = jnp.einsum("bchw,oc->bohw", x_up, conv_w.reshape(out_c, hidden)) \
        + conv_b[None, :, None, None]
    mean = jnp.mean(y, axis=(0, 2, 3), keepdims=True)
    var = jnp.mean((y - mean) ** 2, axis=(0, 2, 3), keepdims=True)
    yn = (y - mean) * jax.lax.rsqrt(var + EPS)
    yn = yn * gamma[None, :, None, None] + beta[None, :, None, None]
    return jnp.maximum(yn, 0.0)


if __name__ == "__main__":
    # Shapes consistent with the module's forward: n_patch a perfect square.
    B, n_patch, hidden = 2, 64, 32          # h = w = 8
    out_channels = 16
    kernel_size = 1                         # -> padding = 0  (CIT configuration)
    scale_factor = 2

    key = jax.random.PRNGKey(0)
    kx, kw, kb = jax.random.split(key, 3)

    x = jax.random.normal(kx, (B, n_patch, hidden), dtype=jnp.float32)

    fan_in = hidden * kernel_size * kernel_size
    bound = 1.0 / (fan_in ** 0.5)
    conv_w = jax.random.uniform(kw, (out_channels, hidden, 1, 1),
                                minval=-bound, maxval=bound, dtype=jnp.float32)
    conv_b = jax.random.uniform(kb, (out_channels,),
                                minval=-bound, maxval=bound, dtype=jnp.float32)
    gamma = jnp.ones((out_channels,), dtype=jnp.float32)
    beta = jnp.zeros((out_channels,), dtype=jnp.float32)

    ref = _reference_forward(x, conv_w, conv_b, gamma, beta, scale_factor)

    # f32 path: faithful to the PyTorch module numerics.
    out = reconstruct_forward(x, conv_w, conv_b, gamma, beta, scale_factor)
    out = jax.block_until_ready(out)
    assert out.shape == (B, out_channels, 16, 16), out.shape
    assert jnp.allclose(out, ref, atol=1e-4, rtol=1e-4)

    # bf16 matmul-operand path (halves input HBM bytes; f32 accumulate/BN).
    out_bf16 = reconstruct_forward(x, conv_w, conv_b, gamma, beta, scale_factor,
                                   compute_dtype=jnp.bfloat16)
    out_bf16 = jax.block_until_ready(out_bf16)
    assert out_bf16.shape == (B, out_channels, 16, 16), out_bf16.shape
    assert jnp.allclose(out_bf16, ref, atol=5e-2, rtol=5e-2)

    print("KERNEL_OK")
</pallas_src>

<mosaic_0001>
module attributes {stable_mosaic.version = 11 : i64} {
  func.func @_stats_kernel(%arg0: i32, %arg1: memref<128x32xf32, #tpu.memory_space<vmem>>, %arg2: memref<32x16xf32, #tpu.memory_space<vmem>>, %arg3: memref<1x16xf32, #tpu.memory_space<vmem>>, %arg4: memref<1x16xf32, #tpu.memory_space<vmem>>) attributes {dimension_semantics = [#tpu.dimension_semantics<arbitrary>], iteration_bounds = array<i64: 1>, scalar_prefetch = 0 : i64, scratch_operands = 0 : i64, tpu.core_type = #tpu.core_type<tc>, window_params = [{transform_indices = @transform_0, window_bounds = array<i64: 128, 32>}, {pipeline_mode = #tpu.pipeline_mode<synchronous>, transform_indices = @transform_1, window_bounds = array<i64: 32, 16>}, {pipeline_mode = #tpu.pipeline_mode<synchronous>, transform_indices = @transform_2, window_bounds = array<i64: 1, 16>}, {pipeline_mode = #tpu.pipeline_mode<synchronous>, transform_indices = @transform_3, window_bounds = array<i64: 1, 16>}]} {
    %c0_i32 = arith.constant 0 : i32
    %0 = arith.cmpi eq, %arg0, %c0_i32 : i32
    %1 = arith.extui %0 : i1 to i32
    %c0_i32_0 = arith.constant 0 : i32
    %2 = arith.cmpi ne, %1, %c0_i32_0 : i32
    scf.if %2 {
      %cst_14 = arith.constant 0.000000e+00 : f32
      %17 = vector.broadcast %cst_14 : f32 to vector<1x16xf32>
      %c0_15 = arith.constant 0 : index
      %c0_16 = arith.constant 0 : index
      %18 = vector.load %arg3[%c0_15, %c0_16] : memref<1x16xf32, #tpu.memory_space<vmem>>, vector<1x16xf32>
      tpu.vector_store %arg3[%c0_15, %c0_16], %17 {strides = array<i32>} : memref<1x16xf32, #tpu.memory_space<vmem>>, vector<1x16xf32>,
      %cst_17 = arith.constant 0.000000e+00 : f32
      %19 = vector.broadcast %cst_17 : f32 to vector<1x16xf32>
      %c0_18 = arith.constant 0 : index
      %c0_19 = arith.constant 0 : index
      %20 = vector.load %arg4[%c0_18, %c0_19] : memref<1x16xf32, #tpu.memory_space<vmem>>, vector<1x16xf32>
      tpu.vector_store %arg4[%c0_18, %c0_19], %19 {strides = array<i32>} : memref<1x16xf32, #tpu.memory_space<vmem>>, vector<1x16xf32>,
    } else {
    }
    %c0 = arith.constant 0 : index
    %c0_1 = arith.constant 0 : index
    %3 = vector.load %arg1[%c0, %c0_1] : memref<128x32xf32, #tpu.memory_space<vmem>>, vector<128x32xf32>
    %c0_2 = arith.constant 0 : index
    %c0_3 = arith.constant 0 : index
    %4 = vector.load %arg2[%c0_2, %c0_3] : memref<32x16xf32, #tpu.memory_space<vmem>>, vector<32x16xf32>
    %cst = arith.constant dense<0.000000e+00> : vector<128x16xf32>
    %5 = tpu.matmul %3, %4, %cst {dimension_numbers = #tpu.dot_dimension_numbers<[1], [0], [0], [1], [0, 0, 1, 1], [], []>} : vector<128x32xf32>, vector<32x16xf32>, vector<128x16xf32> -> vector<128x16xf32>
    %c0_4 = arith.constant 0 : index
    %c0_5 = arith.constant 0 : index
    %6 = vector.load %arg3[%c0_4, %c0_5] : memref<1x16xf32, #tpu.memory_space<vmem>>, vector<1x16xf32>
    %cst_6 = arith.constant dense<0.000000e+00> : vector<16xf32>
    %7 = vector.multi_reduction <add>, %5, %cst_6 [0] : vector<128x16xf32> to vector<16xf32>
    %8 = vector.shape_cast %7 : vector<16xf32> to vector<1x16xf32>
    %9 = arith.addf %6, %8 : vector<1x16xf32>
    %c0_7 = arith.constant 0 : index
    %c0_8 = arith.constant 0 : index
    %10 = vector.load %arg3[%c0_7, %c0_8] : memref<1x16xf32, #tpu.memory_space<vmem>>, vector<1x16xf32>
    tpu.vector_store %arg3[%c0_7, %c0_8], %9 {strides = array<i32>} : memref<1x16xf32, #tpu.memory_space<vmem>>, vector<1x16xf32>,
    %c0_9 = arith.constant 0 : index
    %c0_10 = arith.constant 0 : index
    %11 = vector.load %arg4[%c0_9, %c0_10] : memref<1x16xf32, #tpu.memory_space<vmem>>, vector<1x16xf32>
    %12 = arith.mulf %5, %5 : vector<128x16xf32>
    %cst_11 = arith.constant dense<0.000000e+00> : vector<16xf32>
    %13 = vector.multi_reduction <add>, %12, %cst_11 [0] : vector<128x16xf32> to vector<16xf32>
    %14 = vector.shape_cast %13 : vector<16xf32> to vector<1x16xf32>
    %15 = arith.addf %11, %14 : vector<1x16xf32>
    %c0_12 = arith.constant 0 : index
    %c0_13 = arith.constant 0 : index
    %16 = vector.load %arg4[%c0_12, %c0_13] : memref<1x16xf32, #tpu.memory_space<vmem>>, vector<1x16xf32>
    tpu.vector_store %arg4[%c0_12, %c0_13], %15 {strides = array<i32>} : memref<1x16xf32, #tpu.memory_space<vmem>>, vector<1x16xf32>,
    return
  }
  func.func @transform_0(%arg0: i32) -> (i32, i32) {
    %c0_i32 = arith.constant 0 : i32
    %c0_i32_0 = arith.constant 0 : i32
    return %arg0, %c0_i32 : i32, i32
  }
  func.func @transform_1(%arg0: i32) -> (i32, i32) {
    %c0_i32 = arith.constant 0 : i32
    %c0_i32_0 = arith.constant 0 : i32
    %c0_i32_1 = arith.constant 0 : i32
    return %c0_i32, %c0_i32_0 : i32, i32
  }
  func.func @transform_2(%arg0: i32) -> (i32, i32) {
    %c0_i32 = arith.constant 0 : i32
    %c0_i32_0 = arith.constant 0 : i32
    %c0_i32_1 = arith.constant 0 : i32
    return %c0_i32, %c0_i32_0 : i32, i32
  }
  func.func @transform_3(%arg0: i32) -> (i32, i32) {
    %c0_i32 = arith.constant 0 : i32
    %c0_i32_0 = arith.constant 0 : i32
    %c0_i32_1 = arith.constant 0 : i32
    return %c0_i32, %c0_i32_0 : i32, i32
  }
}

</mosaic_0001>

<llo_original>
// kernel: tpu_custom_call.1
$region0: #{tpu_custom_call.1}
  #allocation0 [shape = 'u32[]', space=smem, size = 0x4, offset = 0x4, fixed_abs, tag = 'smem constant byte address 0x4 - core index']
  #allocation1 [shape = 'u32[144,128]{1,0:T(1,128)}', space=vmem, size = 0x12000, scoped, tag = 'internal scratch']
  %s0 = inlined_call_operand.vmem [shape: f32[128,32], index: 0, kind: input, shape index: {}]
  %s1 = inlined_call_operand.vmem [shape: f32[32,16], index: 1, kind: input, shape index: {}]
  %s2 = inlined_call_operand.hbm [shape: f32[1,16], index: 2, kind: output, shape index: {0}]
  %s3 = inlined_call_operand.hbm [shape: f32[1,16], index: 3, kind: output, shape index: {1}]
  %4 = xla_tuple %s2, %s3
  %s5 = sld [smem:[#allocation0]]
  $region30: #{tpu_custom_call.1} parent=0
    _
  %s7 = ssub.s32 1, %s5
  %s8 = scalar_select 0, %s7, %s5
  $region1: #{tpu_custom_call.1} parent=0
    #allocation2 [shape = 'u8[512]{0}', space=vmem, size = 0x400, scoped, tag = 'output window, operand 0, single buffered']
    #allocation3 [shape = 's32[1]{0}', space=sflag, size = 0x4, scoped, tag = 'scoped memory for tpu_custom_call.1']
    #allocation4 [shape = 'u8[512]{0}', space=vmem, size = 0x400, scoped, tag = 'output window, operand 1, single buffered']
    #allocation5 [shape = 's32[1]{0}', space=sflag, size = 0x4, scoped, tag = 'scoped memory for tpu_custom_call.1']
    %9 = vsyncpa [#allocation3], 0
    %10 = vsyncpa [#allocation5], 0
    // Predicated region
    $region2: #{tpu_custom_call.1} parent=1 // pred_check
      _
    $region3: #{tpu_custom_call.1} parent=1 // pred_check_branch
      %12 = sbr.rel (0) target = $region5
    $region4: #{tpu_custom_call.1} parent=1 // pred_region
      _
    $region5: #{tpu_custom_call.1} parent=1 // pred_fallthru
      _
    // Predicated region
    $region6: #{tpu_custom_call.1} parent=1 // pred_check
      _
    $region7: #{tpu_custom_call.1} parent=1 // pred_check_branch
      %14 = sbr.rel (0) target = $region9
    $region8: #{tpu_custom_call.1} parent=1 // pred_region
      _
    $region9: #{tpu_custom_call.1} parent=1 // pred_fallthru
      _
    %p15 = scmp.eq.s32.totalorder 0, 0
    // Predicated region
    $region10: #{tpu_custom_call.1} parent=1 // pred_check
      %p16 = pneg %p15
    $region11: #{tpu_custom_call.1} parent=1 // pred_check_branch
      %18 = sbr.rel (%p16) target = $region13
    $region12: #{tpu_custom_call.1} parent=1 // pred_region
      %vm19 = vcmask 122880
      %20 = vst.msk [vmem:[#allocation2] sm:$0x1] %vm19, 0.0
      %21 = vst.msk [vmem:[#allocation4] sm:$0x1] %vm19, 0.0
    $region13: #{tpu_custom_call.1} parent=1 // pred_fallthru
      _
    %v22 = vld [vmem:[%s0] sm:$0xff]
    %v23 = vld [vmem:[%s0 + $0x8] sm:$0xff]
    %v24 = vld [vmem:[%s0 + $0x10] sm:$0xff]
    %v25 = vld [vmem:[%s0 + $0x18] sm:$0xff]
    %v26 = vld [vmem:[%s0 + $0x20] sm:$0xff]
    %v27 = vld [vmem:[%s0 + $0x28] sm:$0xff]
    %v28 = vld [vmem:[%s0 + $0x30] sm:$0xff]
    %v29 = vld [vmem:[%s0 + $0x38] sm:$0xff]
    %v30 = vld [vmem:[%s0 + $0x40] sm:$0xff]
    %v31 = vld [vmem:[%s0 + $0x48] sm:$0xff]
    %v32 = vld [vmem:[%s0 + $0x50] sm:$0xff]
    %v33 = vld [vmem:[%s0 + $0x58] sm:$0xff]
    %v34 = vld [vmem:[%s0 + $0x60] sm:$0xff]
    %v35 = vld [vmem:[%s0 + $0x68] sm:$0xff]
    %v36 = vld [vmem:[%s0 + $0x70] sm:$0xff]
    %v37 = vld [vmem:[%s0 + $0x78] sm:$0xff]
    %v38 = vld [vmem:[%s1] sm:$0xff]
    %v39 = vld [vmem:[%s1 + $0x8] sm:$0xff]
    %v40 = vld [vmem:[%s1 + $0x10] sm:$0xff]
    %v41 = vld [vmem:[%s1 + $0x18] sm:$0xff]
    %vm42 = vcmask 261120
    %v44 = vsel %vm42, %v22, 0
    %v47 = vsel %vm42, %v23, 0
    %v50 = vsel %vm42, %v24, 0
    %v53 = vsel %vm42, %v25, 0
    %v56 = vsel %vm42, %v26, 0
    %v59 = vsel %vm42, %v27, 0
    %v62 = vsel %vm42, %v28, 0
    %v65 = vsel %vm42, %v29, 0
    %v68 = vsel %vm42, %v30, 0
    %v71 = vsel %vm42, %v31, 0
    %v74 = vsel %vm42, %v32, 0
    %v77 = vsel %vm42, %v33, 0
    %v80 = vsel %vm42, %v34, 0
    %v83 = vsel %vm42, %v35, 0
    %v86 = vsel %vm42, %v36, 0
    %v89 = vsel %vm42, %v37, 0
    %91 = vmatprep.subr.mxu0 0.0
    %92 = vmatpush1.msra.mxu0 %v38
    %93 = vmatprep.subr.mxu0 0.0
    %94 = vmatpush1.msra.mxu0 %v39
    %95 = vmatprep.subr.mxu0 0.0
    %96 = vmatpush1.msra.mxu0 %v40
    %97 = vmatprep.subr.mxu0 0.0
    %98 = vmatpush1.msra.mxu0 %v41
    %99 = vmatprep.subr.mxu0 0.0
    %100 = vmatpush1.msra.mxu0 0.0
    %101 = vmatprep.subr.mxu0 0.0
    %102 = vmatpush1.msra.mxu0 0.0
    %103 = vmatprep.subr.mxu0 0.0
    %104 = vmatpush1.msra.mxu0 0.0
    %105 = vmatprep.subr.mxu0 0.0
    %106 = vmatpush1.msra.mxu0 0.0
    %107 = vmatprep.subr.mxu0 0.0
    %108 = vmatpush1.msra.mxu0 0.0
    %109 = vmatprep.subr.mxu0 0.0
    %110 = vmatpush1.msra.mxu0 0.0
    %111 = vmatprep.subr.mxu0 0.0
    %112 = vmatpush1.msra.mxu0 0.0
    %113 = vmatprep.subr.mxu0 0.0
    %114 = vmatpush1.msra.mxu0 0.0
    %115 = vmatprep.subr.mxu0 0.0
    %116 = vmatpush1.msra.mxu0 0.0
    %117 = vmatprep.subr.mxu0 0.0
    %118 = vmatpush1.msra.mxu0 0.0
    %119 = vmatprep.subr.mxu0 0.0
    %120 = vmatpush1.msra.mxu0 0.0
    %121 = vmatprep.subr.mxu0 0.0
    %122 = vmatpush1.msra.mxu0 0.0
    %123 = vmatprep.subr.mxu0 0.0
    %124 = vmatpush1.msra.mxu0 0.0
    %125 = vmatprep.subr.mxu0 0.0
    %126 = vmatpush1.msra.mxu0 0.0
    %127 = vmatprep.subr.mxu0 0.0
    %128 = vmatpush1.msra.mxu0 0.0
    %129 = vmatprep.subr.mxu0 0.0
    %130 = vmatpush1.msra.mxu0 0.0
    %131 = vmatprep.subr.mxu0 0.0
    %132 = vmatpush1.msra.mxu0 0.0
    %133 = vmatprep.subr.mxu0 0.0
    %134 = vmatpush1.msra.mxu0 0.0
    %135 = vmatprep.subr.mxu0 0.0
    %136 = vmatpush1.msra.mxu0 0.0
    %137 = vmatprep.subr.mxu0 0.0
    %138 = vmatpush1.msra.mxu0 0.0
    %139 = vmatprep.subr.mxu0 0.0
    %140 = vmatpush1.msra.mxu0 0.0
    %141 = vmatprep.subr.mxu0 0.0
    %142 = vmatpush1.msra.mxu0 0.0
    %143 = vmatprep.subr.mxu0 0.0
    %144 = vmatpush1.msra.mxu0 0.0
    %145 = vmatprep.subr.mxu0 0.0
    %146 = vmatpush1.msra.mxu0 0.0
    %147 = vmatprep.subr.mxu0 0.0
    %148 = vmatpush1.msra.mxu0 0.0
    %149 = vmatprep.subr.mxu0 0.0
    %150 = vmatpush1.msra.mxu0 0.0
    %151 = vmatprep.subr.mxu0 0.0
    %152 = vmatpush1.msra.mxu0 0.0
    %153 = vmatprep.subr.mxu0 0.0
    %154 = vmatpush1.msra.mxu0 0.0
    %155 = vmatprep.mubr.f32.mxu0 0.0
    %156 = vmatmul.mubr.f32.gmra.mrb[0].mxu0 %v44
    %v157 = vpop.f32.mrb[0].mxu0
    %v158 = vadd.f32 0.0, %v157
    %v159 = vpop.f32.mrb[0].mxu0
    %160 = vmatprep.mubr.f32.mxu0 0.0
    %161 = vmatmul.mubr.f32.gmra.mrb[0].mxu0 %v47
    %v162 = vpop.f32.mrb[0].mxu0
    %v163 = vadd.f32 0.0, %v162
    %v164 = vpop.f32.mrb[0].mxu0
    %165 = vmatprep.mubr.f32.mxu0 0.0
    %166 = vmatmul.mubr.f32.gmra.mrb[0].mxu0 %v50
    %v167 = vpop.f32.mrb[0].mxu0
    %v168 = vadd.f32 0.0, %v167
    %v169 = vpop.f32.mrb[0].mxu0
    %170 = vmatprep.mubr.f32.mxu0 0.0
    %171 = vmatmul.mubr.f32.gmra.mrb[0].mxu0 %v53
    %v172 = vpop.f32.mrb[0].mxu0
    %v173 = vadd.f32 0.0, %v172
    %v174 = vpop.f32.mrb[0].mxu0
    %175 = vmatprep.mubr.f32.mxu0 0.0
    %176 = vmatmul.mubr.f32.gmra.mrb[0].mxu0 %v56
    %v177 = vpop.f32.mrb[0].mxu0
    %v178 = vadd.f32 0.0, %v177
    %v179 = vpop.f32.mrb[0].mxu0
    %180 = vmatprep.mubr.f32.mxu0 0.0
    %181 = vmatmul.mubr.f32.gmra.mrb[0].mxu0 %v59
    %v182 = vpop.f32.mrb[0].mxu0
    %v183 = vadd.f32 0.0, %v182
    %v184 = vpop.f32.mrb[0].mxu0
    %185 = vmatprep.mubr.f32.mxu0 0.0
    %186 = vmatmul.mubr.f32.gmra.mrb[0].mxu0 %v62
    %v187 = vpop.f32.mrb[0].mxu0
    %v188 = vadd.f32 0.0, %v187
    %v189 = vpop.f32.mrb[0].mxu0
    %190 = vmatprep.mubr.f32.mxu0 0.0
    %191 = vmatmul.mubr.f32.gmra.mrb[0].mxu0 %v65
    %v192 = vpop.f32.mrb[0].mxu0
    %v193 = vadd.f32 0.0, %v192
    %v194 = vpop.f32.mrb[0].mxu0
    %195 = vmatprep.mubr.f32.mxu0 0.0
    %196 = vmatmul.mubr.f32.gmra.mrb[0].mxu0 %v68
    %v197 = vpop.f32.mrb[0].mxu0
    %v198 = vadd.f32 0.0, %v197
    %v199 = vpop.f32.mrb[0].mxu0
    %200 = vmatprep.mubr.f32.mxu0 0.0
    %201 = vmatmul.mubr.f32.gmra.mrb[0].mxu0 %v71
    %v202 = vpop.f32.mrb[0].mxu0
    %v203 = vadd.f32 0.0, %v202
    %v204 = vpop.f32.mrb[0].mxu0
    %205 = vmatprep.mubr.f32.mxu0 0.0
    %206 = vmatmul.mubr.f32.gmra.mrb[0].mxu0 %v74
    %v207 = vpop.f32.mrb[0].mxu0
    %v208 = vadd.f32 0.0, %v207
    %v209 = vpop.f32.mrb[0].mxu0
    %210 = vmatprep.mubr.f32.mxu0 0.0
    %211 = vmatmul.mubr.f32.gmra.mrb[0].mxu0 %v77
    %v212 = vpop.f32.mrb[0].mxu0
    %v213 = vadd.f32 0.0, %v212
    %v214 = vpop.f32.mrb[0].mxu0
    %215 = vmatprep.mubr.f32.mxu0 0.0
    %216 = vmatmul.mubr.f32.gmra.mrb[0].mxu0 %v80
    %v217 = vpop.f32.mrb[0].mxu0
    %v218 = vadd.f32 0.0, %v217
    %v219 = vpop.f32.mrb[0].mxu0
    %220 = vmatprep.mubr.f32.mxu0 0.0
    %221 = vmatmul.mubr.f32.gmra.mrb[0].mxu0 %v83
    %v222 = vpop.f32.mrb[0].mxu0
    %v223 = vadd.f32 0.0, %v222
    %v224 = vpop.f32.mrb[0].mxu0
    %225 = vmatprep.mubr.f32.mxu0 0.0
    %226 = vmatmul.mubr.f32.gmra.mrb[0].mxu0 %v86
    %v227 = vpop.f32.mrb[0].mxu0
    %v228 = vadd.f32 0.0, %v227
    %v229 = vpop.f32.mrb[0].mxu0
    %230 = vmatprep.mubr.f32.mxu0 0.0
    %231 = vmatmul.mubr.f32.gmra.mrb[0].mxu0 %v89
    %v232 = vpop.f32.mrb[0].mxu0
    %v233 = vadd.f32 0.0, %v232
    %v234 = vpop.f32.mrb[0].mxu0
    %235 = vdwg.mxu0
    %v236 = vld [vmem:[#allocation2] sm:$0x1]
    %vm237 = vcmask 130048
    %v238 = vsel %vm237, %v158, 0.0
    %v239 = vsel %vm237, %v163, 0.0
    %v240 = vadd.f32 %v238, %v239
    %v241 = vsel %vm237, %v168, 0.0
    %v242 = vadd.f32 %v240, %v241
    %v243 = vsel %vm237, %v173, 0.0
    %v244 = vadd.f32 %v242, %v243
    %v245 = vsel %vm237, %v178, 0.0
    %v246 = vadd.f32 %v244, %v245
    %v247 = vsel %vm237, %v183, 0.0
    %v248 = vadd.f32 %v246, %v247
    %v249 = vsel %vm237, %v188, 0.0
    %v250 = vadd.f32 %v248, %v249
    %v251 = vsel %vm237, %v193, 0.0
    %v252 = vadd.f32 %v250, %v251
    %v253 = vsel %vm237, %v198, 0.0
    %v254 = vadd.f32 %v252, %v253
    %v255 = vsel %vm237, %v203, 0.0
    %v256 = vadd.f32 %v254, %v255
    %v257 = vsel %vm237, %v208, 0.0
    %v258 = vadd.f32 %v256, %v257
    %v259 = vsel %vm237, %v213, 0.0
    %v260 = vadd.f32 %v258, %v259
    %v261 = vsel %vm237, %v218, 0.0
    %v262 = vadd.f32 %v260, %v261
    %v263 = vsel %vm237, %v223, 0.0
    %v264 = vadd.f32 %v262, %v263
    %v265 = vsel %vm237, %v228, 0.0
    %v266 = vadd.f32 %v264, %v265
    %v267 = vsel %vm237, %v233, 0.0
    %v268 = vadd.f32 %v266, %v267
    %v269 = vrot.slane %v268, 4
    %v270 = vadd.f32 %v268, %v269
    %v271 = vrot.slane %v270, 2
    %v272 = vadd.f32 %v270, %v271
    %v273 = vrot.slane %v272, 1
    %v274 = vadd.f32 %v272, %v273
    %v275 = vadd.f32 %v236, %v274
    %vm276 = vcmask 122880
    %277 = vst.msk [vmem:[#allocation2] sm:$0x1] %vm276, %v275
    %v278 = vld [vmem:[#allocation4] sm:$0x1]
    %v279 = vmul.f32 %v158, %v158
    %v280 = vmul.f32 %v163, %v163
    %v281 = vmul.f32 %v168, %v168
    %v282 = vmul.f32 %v173, %v173
    %v283 = vmul.f32 %v178, %v178
    %v284 = vmul.f32 %v183, %v183
    %v285 = vmul.f32 %v188, %v188
    %v286 = vmul.f32 %v193, %v193
    %v287 = vmul.f32 %v198, %v198
    %v288 = vmul.f32 %v203, %v203
    %v289 = vmul.f32 %v208, %v208
    %v290 = vmul.f32 %v213, %v213
    %v291 = vmul.f32 %v218, %v218
    %v292 = vmul.f32 %v223, %v223
    %v293 = vmul.f32 %v228, %v228
    %v294 = vmul.f32 %v233, %v233
    %v295 = vsel %vm237, %v279, 0.0
    %v296 = vsel %vm237, %v280, 0.0
    %v297 = vadd.f32 %v295, %v296
    %v298 = vsel %vm237, %v281, 0.0
    %v299 = vadd.f32 %v297, %v298
    %v300 = vsel %vm237, %v282, 0.0
    %v301 = vadd.f32 %v299, %v300
    %v302 = vsel %vm237, %v283, 0.0
    %v303 = vadd.f32 %v301, %v302
    %v304 = vsel %vm237, %v284, 0.0
    %v305 = vadd.f32 %v303, %v304
    %v306 = vsel %vm237, %v285, 0.0
    %v307 = vadd.f32 %v305, %v306
    %v308 = vsel %vm237, %v286, 0.0
    %v309 = vadd.f32 %v307, %v308
    %v310 = vsel %vm237, %v287, 0.0
    %v311 = vadd.f32 %v309, %v310
    %v312 = vsel %vm237, %v288, 0.0
    %v313 = vadd.f32 %v311, %v312
    %v314 = vsel %vm237, %v289, 0.0
    %v315 = vadd.f32 %v313, %v314
    %v316 = vsel %vm237, %v290, 0.0
    %v317 = vadd.f32 %v315, %v316
    %v318 = vsel %vm237, %v291, 0.0
    %v319 = vadd.f32 %v317, %v318
    %v320 = vsel %vm237, %v292, 0.0
    %v321 = vadd.f32 %v319, %v320
    %v322 = vsel %vm237, %v293, 0.0
    %v323 = vadd.f32 %v321, %v322
    %v324 = vsel %vm237, %v294, 0.0
    %v325 = vadd.f32 %v323, %v324
    %v326 = vrot.slane %v325, 4
    %v327 = vadd.f32 %v325, %v326
    %v328 = vrot.slane %v327, 2
    %v329 = vadd.f32 %v327, %v328
    %v330 = vrot.slane %v329, 1
    %v331 = vadd.f32 %v329, %v330
    %v332 = vadd.f32 %v278, %v331
    %333 = vst.msk [vmem:[#allocation4] sm:$0x1] %vm276, %v332
    // Predicated region
    $region14: #{tpu_custom_call.1} parent=1 // pred_check
      _
    $region15: #{tpu_custom_call.1} parent=1 // pred_check_branch
      %335 = sbr.rel (0) target = $region17
    $region16: #{tpu_custom_call.1} parent=1 // pred_region
      %s337 = ssub.s32 16, 16
      %338 = vsyncadd [#allocation3], %s337
      %s340 = sshll.u32 [#allocation2], 4
      %s341 = int_to_ptr.vmem [resolvable:$true] %s340
      %343 = dma.vmem_to_hbm [thread:$0]  %s341, 16, %s2, [#allocation3]
    $region17: #{tpu_custom_call.1} parent=1 // pred_fallthru
      _
    // Predicated region
    $region18: #{tpu_custom_call.1} parent=1 // pred_check
      _
    $region19: #{tpu_custom_call.1} parent=1 // pred_check_branch
      %345 = sbr.rel (0) target = $region21
    $region20: #{tpu_custom_call.1} parent=1 // pred_region
      %s347 = ssub.s32 16, 16
      %348 = vsyncadd [#allocation5], %s347
      %s350 = sshll.u32 [#allocation4], 4
      %s351 = int_to_ptr.vmem [resolvable:$true] %s350
      %353 = dma.vmem_to_hbm [thread:$0]  %s351, 16, %s3, [#allocation5]
    $region21: #{tpu_custom_call.1} parent=1 // pred_fallthru
      _
    // Predicated region
    $region22: #{tpu_custom_call.1} parent=1 // pred_check
      _
    $region23: #{tpu_custom_call.1} parent=1 // pred_check_branch
      %355 = sbr.rel (0) target = $region25
    $region24: #{tpu_custom_call.1} parent=1 // pred_region
      %356 = dma.done [#allocation3], 16
    $region25: #{tpu_custom_call.1} parent=1 // pred_fallthru
      _
    // Predicated region
    $region26: #{tpu_custom_call.1} parent=1 // pred_check
      _
    $region27: #{tpu_custom_call.1} parent=1 // pred_check_branch
      %358 = sbr.rel (0) target = $region29
    $region28: #{tpu_custom_call.1} parent=1 // pred_region
      %359 = dma.done [#allocation5], 16
    $region29: #{tpu_custom_call.1} parent=1 // pred_fallthru
      _
    %360 = vsyncpa [#allocation3], 1
    %361 = vsyncpa [#allocation5], 1

</llo_original>
